<compile_context>
chip_gen: v7x
topology: tpu7x:2x2x1
jax: 0.10.0
libtpu: 0.0.40
codegen_flags: <defaults>
</compile_context>

<pallas_src>
import functools

import jax
import jax.numpy as jnp
from jax import lax
from jax.experimental import pallas as pl
from jax.experimental.pallas import tpu as pltpu


def _bert_embeddings_kernel(seq_len, tile_s, vocab_size, eps, use_position, *refs):
    if use_position:
        (ids_ref, tt_ref, word_hbm, tt_tab_ref, pos_tab_ref,
         gamma_ref, beta_ref, out_ref, wbuf, sem) = refs
    else:
        (ids_ref, tt_ref, word_hbm, tt_tab_ref,
         gamma_ref, beta_ref, out_ref, wbuf, sem) = refs
        pos_tab_ref = None

    b = pl.program_id(0)
    st = pl.program_id(1)
    n_s = pl.num_programs(1)
    slot = st & 1                      # current wbuf slot for tile `st`
    row_base = b * seq_len             # flat index of this batch row's first token

    def issue_tile(tile_idx, dst_slot):
        """Issue one row DMA per token of `tile_idx` into wbuf[dst_slot]."""
        r0 = row_base + tile_idx * tile_s

        @pl.loop(0, tile_s)
        def _issue(r):
            idx = ids_ref[r0 + r]                      # SMEM scalar read (before waits)
            idx = jnp.clip(idx, 0, vocab_size - 1)     # clamp like jnp indexing
            pltpu.make_async_copy(word_hbm.at[pl.ds(idx, 1)],
                                  wbuf.at[dst_slot, pl.ds(r, 1)],
                                  sem.at[dst_slot]).start()

    # Prime the pipeline: first seq tile of each batch row goes into slot 0.
    @pl.when(st == 0)
    def _prime():
        issue_tile(0, 0)

    # Prefetch the NEXT seq tile (same batch row) into the other slot BEFORE the
    # wait/compute, so its gather overlaps with this tile's LayerNorm.
    @pl.when(st + 1 < n_s)
    def _prefetch():
        issue_tile(st + 1, 1 - slot)

    # Single aggregate wait for the current slot: the DMA semaphore counts bytes,
    # so one descriptor spanning the whole (tile_s, H) slot waits for all tile_s
    # row copies that targeted sem[slot].
    pltpu.make_async_copy(word_hbm.at[pl.ds(0, tile_s)],
                          wbuf.at[slot],
                          sem.at[slot]).wait()

    emb = wbuf[slot].astype(jnp.float32)               # (tile_s, H)

    # ---- token-type embedding: one FMA (row0 + mask * (row1 - row0)).
    # NOTE: token-type vocab is 2 in the module; any tt != 0 maps to row 1.
    tt_tab = tt_tab_ref[...].astype(jnp.float32)       # (2, H)
    base = tt_tab[0:1, :]
    delta = tt_tab[1:2, :] - base
    mask = (tt_ref[0] != 0).astype(jnp.float32)        # (tile_s, 1)
    emb = emb + base + mask * delta

    # ---- position embedding: contiguous rows delivered by BlockSpec slice.
    if use_position:
        emb = emb + pos_tab_ref[...].astype(jnp.float32)

    # ---- FastLayerNorm: fused statistics (one traversal), rsqrt on the EUP.
    inv_h = 1.0 / emb.shape[-1]
    s1 = jnp.sum(emb, axis=-1, keepdims=True)
    s2 = jnp.sum(emb * emb, axis=-1, keepdims=True)
    mean = s1 * inv_h
    var = s2 * inv_h - mean * mean
    xhat = (emb - mean) * lax.rsqrt(var + eps)
    y = gamma_ref[...].astype(jnp.float32) * xhat + beta_ref[...].astype(jnp.float32)
    out_ref[0] = y.astype(out_ref.dtype)
    # Dropout: identity in eval mode -> omitted.


def _pick_tile(S, max_tile=512):
    if S <= max_tile:
        return S
    for t in (512, 256, 128, 64, 32, 16, 8):
        if t <= max_tile and S % t == 0:
            return t
    return S


def bert_embeddings(input_ids, token_type_ids, params, *, use_rotary=True,
                    eps=1e-12, tile_s=None):
    """Pallas implementation of BertEmbeddings.forward (eval mode)."""
    B, S = input_ids.shape
    word = params["word_embeddings"]
    V, H = word.shape
    out_dtype = word.dtype

    if token_type_ids is None:
        token_type_ids = jnp.zeros_like(input_ids)

    if tile_s is None:
        tile_s = _pick_tile(S)
    assert S % tile_s == 0, "seq length must be divisible by the seq tile"
    assert tile_s % 8 == 0, "seq tile must be a multiple of 8 (sublane constraint)"
    assert tile_s <= V, "seq tile must not exceed vocab rows (aggregate DMA wait)"
    assert B * S <= (1 << 17), "id vector too large for one SMEM scalar prefetch"
    n_s = S // tile_s
    use_position = not use_rotary

    ids_flat = input_ids.reshape(B * S).astype(jnp.int32)       # scalar prefetch (SMEM)
    tt = token_type_ids.reshape(B, S, 1).astype(jnp.int32)      # per-row ids (VMEM)

    inputs = [ids_flat, tt, word, params["token_type_embeddings"]]
    in_specs = [
        pl.BlockSpec((1, tile_s, 1), lambda b, s, ids: (b, s, 0)),   # token-type ids
        pl.BlockSpec(memory_space=pl.ANY),                           # word table in HBM
        pl.BlockSpec((2, H), lambda b, s, ids: (0, 0)),              # token-type table
    ]
    if use_position:
        pos_tab = params["position_embeddings"]
        assert pos_tab.shape[0] >= S, "max_position_embeddings must cover seq_len"
        inputs.append(pos_tab)
        in_specs.append(pl.BlockSpec((tile_s, H), lambda b, s, ids: (s, 0)))
    inputs.append(params["ln_weight"].reshape(1, H))
    inputs.append(params["ln_bias"].reshape(1, H))
    in_specs.append(pl.BlockSpec((1, H), lambda b, s, ids: (0, 0)))
    in_specs.append(pl.BlockSpec((1, H), lambda b, s, ids: (0, 0)))

    # Explicit VMEM budget (v7x has only 64 MiB physical VMEM).
    w_isz = jnp.dtype(word.dtype).itemsize
    o_isz = jnp.dtype(out_dtype).itemsize
    vmem_bytes = 2 * tile_s * H * w_isz           # wbuf (two slots)
    vmem_bytes += 2 * tile_s * H * o_isz          # output double buffer
    vmem_bytes += 2 * tile_s * 128 * 4            # token-type id block (lane padded)
    if use_position:
        p_isz = jnp.dtype(params["position_embeddings"].dtype).itemsize
        vmem_bytes += 2 * tile_s * H * p_isz
    vmem_bytes += 8 * H * 4                       # tt table + gamma + beta (approx)
    vmem_limit = int(min(2 * vmem_bytes + (8 << 20), 100 << 20))

    grid_spec = pltpu.PrefetchScalarGridSpec(
        num_scalar_prefetch=1,
        grid=(B, n_s),
        in_specs=in_specs,
        out_specs=pl.BlockSpec((1, tile_s, H), lambda b, s, ids: (b, s, 0)),
        scratch_shapes=[
            pltpu.VMEM((2, tile_s, H), word.dtype),   # double-buffered gathered rows
            pltpu.SemaphoreType.DMA((2,)),            # one DMA sem per slot
        ],
    )

    kernel = functools.partial(
        _bert_embeddings_kernel, S, tile_s, V, eps, use_position)

    out = pl.pallas_call(
        kernel,
        out_shape=jax.ShapeDtypeStruct((B, S, H), out_dtype),
        grid_spec=grid_spec,
        compiler_params=pltpu.CompilerParams(
            # batch: parallel (megacore sharding); seq: arbitrary (required so the
            # cross-tile prefetch always targets the next sequential tile per core).
            dimension_semantics=("parallel", "arbitrary"),
            vmem_limit_bytes=vmem_limit),
    )(*inputs)
    return out


def _reference(input_ids, token_type_ids, params, *, use_rotary=True, eps=1e-12):
    """Pure-JAX reference mirroring the PyTorch forward (eval mode)."""
    w = params["word_embeddings"][input_ids]
    t = params["token_type_embeddings"][token_type_ids]
    emb = w + t
    if not use_rotary:
        S = input_ids.shape[1]
        pos_ids = jnp.broadcast_to(jnp.arange(S), input_ids.shape)
        emb = emb + params["position_embeddings"][pos_ids]
    u = jnp.mean(emb, axis=-1, keepdims=True)
    s = jnp.mean((emb - u) ** 2, axis=-1, keepdims=True)
    x = (emb - u) / jnp.sqrt(s + eps)
    return params["ln_weight"] * x + params["ln_bias"]


if __name__ == "__main__":
    # Small config: batch=2, seq=32, hidden=128 (lane-dense), vocab=64, max_pos=32.
    B, S, H, V, P = 2, 32, 128, 64, 32

    key = jax.random.PRNGKey(0)
    k_ids, k_tt, k_w, k_t, k_p = jax.random.split(key, 5)

    input_ids = jax.random.randint(k_ids, (B, S), 0, V, dtype=jnp.int32)
    token_type_ids = jax.random.randint(k_tt, (B, S), 0, 2, dtype=jnp.int32)

    params = {
        "word_embeddings": 0.02 * jax.random.normal(k_w, (V, H), jnp.float32),
        "token_type_embeddings": 0.02 * jax.random.normal(k_t, (2, H), jnp.float32),
        "position_embeddings": 0.02 * jax.random.normal(k_p, (P, H), jnp.float32),
        "ln_weight": jnp.ones((H,), jnp.float32),
        "ln_bias": jnp.zeros((H,), jnp.float32),
    }

    ok = True
    # (use_rotary, explicit seq tile): tile 8 exercises the multi-tile prefetch path,
    # tile None picks S (single tile, prime-only path).
    for use_rotary, tile in ((True, 8), (False, 8), (False, None)):
        out = bert_embeddings(input_ids, token_type_ids, params,
                              use_rotary=use_rotary, tile_s=tile)
        out = jax.block_until_ready(out)
        ref = _reference(input_ids, token_type_ids, params, use_rotary=use_rotary)
        assert out.shape == (B, S, H)
        ok &= bool(jnp.allclose(out, ref, atol=1e-5, rtol=1e-5))

    assert ok, "mismatch vs reference"
    print("KERNEL_OK")
</pallas_src>

<mosaic_0001>
module attributes {stable_mosaic.version = 11 : i64} {
  func.func @_bert_embeddings_kernel(%arg0: i32, %arg1: i32, %arg2: memref<64xi32, #tpu.memory_space<smem>>, %arg3: memref<1x8x1xi32, #tpu.memory_space<vmem>>, %arg4: memref<64x128xf32, #tpu.memory_space<any>>, %arg5: memref<2x128xf32, #tpu.memory_space<vmem>>, %arg6: memref<1x128xf32, #tpu.memory_space<vmem>>, %arg7: memref<1x128xf32, #tpu.memory_space<vmem>>, %arg8: memref<1x8x128xf32, #tpu.memory_space<vmem>>, %arg9: memref<2x8x128xf32, #tpu.memory_space<vmem>>, %arg10: memref<2x!tpu.dma_semaphore, #tpu.memory_space<semaphore_mem>>) attributes {dimension_semantics = [#tpu.dimension_semantics<parallel>, #tpu.dimension_semantics<arbitrary>], iteration_bounds = array<i64: 2, 4>, scalar_prefetch = 1 : i64, scratch_operands = 2 : i64, tpu.core_type = #tpu.core_type<tc>, window_params = [{transform_indices = @transform_0, window_bounds = array<i64: 1, 8, 1>}, {}, {pipeline_mode = #tpu.pipeline_mode<synchronous>, transform_indices = @transform_2, window_bounds = array<i64: 2, 128>}, {pipeline_mode = #tpu.pipeline_mode<synchronous>, transform_indices = @transform_3, window_bounds = array<i64: 1, 128>}, {pipeline_mode = #tpu.pipeline_mode<synchronous>, transform_indices = @transform_4, window_bounds = array<i64: 1, 128>}, {transform_indices = @transform_5, window_bounds = array<i64: 1, 8, 128>}]} {
    %c1_i32 = arith.constant 1 : i32
    %0 = arith.andi %arg1, %c1_i32 : i32
    %c32_i32 = arith.constant 32 : i32
    %1 = arith.muli %arg0, %c32_i32 : i32
    %c0_i32 = arith.constant 0 : i32
    %2 = arith.cmpi eq, %arg1, %c0_i32 : i32
    %3 = arith.extui %2 : i1 to i32
    %c0_i32_0 = arith.constant 0 : i32
    %4 = arith.cmpi ne, %3, %c0_i32_0 : i32
    scf.if %4 {
      %c0_i32_25 = arith.constant 0 : i32
      %60 = arith.addi %1, %c0_i32_25 : i32
      %c0_i32_26 = arith.constant 0 : i32
      %c8_i32 = arith.constant 8 : i32
      %61 = arith.addi %c0_i32_26, %c8_i32 : i32
      %c1_i32_27 = arith.constant 1 : i32
      scf.for %arg11 = %c0_i32_26 to %61 step %c1_i32_27  : i32 {
        %c1_i32_29 = arith.constant 1 : i32
        %62 = arith.muli %arg11, %c1_i32_29 : i32
        %c0_i32_30 = arith.constant 0 : i32
        %63 = arith.addi %c0_i32_30, %62 : i32
        %64 = arith.addi %60, %63 : i32
        %65 = arith.index_cast %64 : i32 to index
        %66 = memref.load %arg2[%65] : memref<64xi32, #tpu.memory_space<smem>>
        %c0_i32_31 = arith.constant 0 : i32
        %c63_i32 = arith.constant 63 : i32
        %67 = arith.maxsi %c0_i32_31, %66 : i32
        %68 = arith.minsi %c63_i32, %67 : i32
        %c0_i32_32 = arith.constant 0 : i32
        %c0_i32_33 = arith.constant 0 : i32
        %c0_i32_34 = arith.constant 0 : i32
        %69 = tpu.memref_slice %arg4[%68, %c0_i32_34] : memref<64x128xf32, #tpu.memory_space<any>> -> memref<1x128xf32, #tpu.memory_space<any>>
        %c0_i32_35 = arith.constant 0 : i32
        %70 = tpu.memref_slice %arg9[%c0_i32_32, %63, %c0_i32_35] : memref<2x8x128xf32, #tpu.memory_space<vmem>> -> memref<1x1x128xf32, #tpu.memory_space<vmem>>
        %71 = tpu.memref_squeeze %70 : memref<1x1x128xf32, #tpu.memory_space<vmem>> -> memref<1x128xf32, #tpu.memory_space<vmem>>
        %72 = tpu.memref_slice %arg10[%c0_i32_33] : memref<2x!tpu.dma_semaphore, #tpu.memory_space<semaphore_mem>> -> memref<1x!tpu.dma_semaphore, #tpu.memory_space<semaphore_mem>>
        %73 = tpu.memref_squeeze %72 : memref<1x!tpu.dma_semaphore, #tpu.memory_space<semaphore_mem>> -> memref<!tpu.dma_semaphore, #tpu.memory_space<semaphore_mem>>
        tpu.enqueue_dma source(%69 : memref<1x128xf32, #tpu.memory_space<any>>) target(%71 : memref<1x128xf32, #tpu.memory_space<vmem>>) target_semaphore(%73 : memref<!tpu.dma_semaphore, #tpu.memory_space<semaphore_mem>>)
      }
      %c8_i32_28 = arith.constant 8 : i32
    } else {
    }
    %c1_i32_1 = arith.constant 1 : i32
    %5 = arith.addi %arg1, %c1_i32_1 : i32
    %c4_i32 = arith.constant 4 : i32
    %6 = arith.cmpi slt, %5, %c4_i32 : i32
    %7 = arith.extui %6 : i1 to i32
    %c0_i32_2 = arith.constant 0 : i32
    %8 = arith.cmpi ne, %7, %c0_i32_2 : i32
    scf.if %8 {
      %c1_i32_25 = arith.constant 1 : i32
      %60 = arith.addi %arg1, %c1_i32_25 : i32
      %c1_i32_26 = arith.constant 1 : i32
      %61 = arith.subi %c1_i32_26, %0 : i32
      %c8_i32 = arith.constant 8 : i32
      %62 = arith.muli %60, %c8_i32 : i32
      %63 = arith.addi %1, %62 : i32
      %c0_i32_27 = arith.constant 0 : i32
      %c8_i32_28 = arith.constant 8 : i32
      %64 = arith.addi %c0_i32_27, %c8_i32_28 : i32
      %c1_i32_29 = arith.constant 1 : i32
      scf.for %arg11 = %c0_i32_27 to %64 step %c1_i32_29  : i32 {
        %c1_i32_31 = arith.constant 1 : i32
        %65 = arith.muli %arg11, %c1_i32_31 : i32
        %c0_i32_32 = arith.constant 0 : i32
        %66 = arith.addi %c0_i32_32, %65 : i32
        %67 = arith.addi %63, %66 : i32
        %68 = arith.index_cast %67 : i32 to index
        %69 = memref.load %arg2[%68] : memref<64xi32, #tpu.memory_space<smem>>
        %c0_i32_33 = arith.constant 0 : i32
        %c63_i32 = arith.constant 63 : i32
        %70 = arith.maxsi %c0_i32_33, %69 : i32
        %71 = arith.minsi %c63_i32, %70 : i32
        %c0_i32_34 = arith.constant 0 : i32
        %72 = tpu.memref_slice %arg4[%71, %c0_i32_34] : memref<64x128xf32, #tpu.memory_space<any>> -> memref<1x128xf32, #tpu.memory_space<any>>
        %c0_i32_35 = arith.constant 0 : i32
        %73 = tpu.memref_slice %arg9[%61, %66, %c0_i32_35] : memref<2x8x128xf32, #tpu.memory_space<vmem>> -> memref<1x1x128xf32, #tpu.memory_space<vmem>>
        %74 = tpu.memref_squeeze %73 : memref<1x1x128xf32, #tpu.memory_space<vmem>> -> memref<1x128xf32, #tpu.memory_space<vmem>>
        %75 = tpu.memref_slice %arg10[%61] : memref<2x!tpu.dma_semaphore, #tpu.memory_space<semaphore_mem>> -> memref<1x!tpu.dma_semaphore, #tpu.memory_space<semaphore_mem>>
        %76 = tpu.memref_squeeze %75 : memref<1x!tpu.dma_semaphore, #tpu.memory_space<semaphore_mem>> -> memref<!tpu.dma_semaphore, #tpu.memory_space<semaphore_mem>>
        tpu.enqueue_dma source(%72 : memref<1x128xf32, #tpu.memory_space<any>>) target(%74 : memref<1x128xf32, #tpu.memory_space<vmem>>) target_semaphore(%76 : memref<!tpu.dma_semaphore, #tpu.memory_space<semaphore_mem>>)
      }
      %c8_i32_30 = arith.constant 8 : i32
    } else {
    }
    %c0_i32_3 = arith.constant 0 : i32
    %c0_i32_4 = arith.constant 0 : i32
    %9 = tpu.memref_slice %arg4[%c0_i32_3, %c0_i32_4] : memref<64x128xf32, #tpu.memory_space<any>> -> memref<8x128xf32, #tpu.memory_space<any>>
    %c0_i32_5 = arith.constant 0 : i32
    %c0_i32_6 = arith.constant 0 : i32
    %10 = tpu.memref_slice %arg9[%0, %c0_i32_5, %c0_i32_6] : memref<2x8x128xf32, #tpu.memory_space<vmem>> -> memref<1x8x128xf32, #tpu.memory_space<vmem>>
    %11 = tpu.memref_squeeze %10 : memref<1x8x128xf32, #tpu.memory_space<vmem>> -> memref<8x128xf32, #tpu.memory_space<vmem>>
    %12 = tpu.memref_slice %arg10[%0] : memref<2x!tpu.dma_semaphore, #tpu.memory_space<semaphore_mem>> -> memref<1x!tpu.dma_semaphore, #tpu.memory_space<semaphore_mem>>
    %13 = tpu.memref_squeeze %12 : memref<1x!tpu.dma_semaphore, #tpu.memory_space<semaphore_mem>> -> memref<!tpu.dma_semaphore, #tpu.memory_space<semaphore_mem>>
    tpu.wait_dma2 semaphore(%13 : memref<!tpu.dma_semaphore, #tpu.memory_space<semaphore_mem>>) src(%9 : memref<8x128xf32, #tpu.memory_space<any>>) dst(%11 : memref<8x128xf32, #tpu.memory_space<vmem>>)
    %14 = arith.index_cast %0 : i32 to index
    %c0 = arith.constant 0 : index
    %c0_7 = arith.constant 0 : index
    %15 = vector.load %arg9[%14, %c0, %c0_7] : memref<2x8x128xf32, #tpu.memory_space<vmem>>, vector<1x8x128xf32>
    %16 = vector.shape_cast %15 : vector<1x8x128xf32> to vector<8x128xf32>
    %c0_8 = arith.constant 0 : index
    %c0_9 = arith.constant 0 : index
    %17 = vector.load %arg5[%c0_8, %c0_9] : memref<2x128xf32, #tpu.memory_space<vmem>>, vector<2x128xf32>
    %18 = vector.extract_strided_slice %17 {offsets = [0, 0], sizes = [1, 128], strides = [1, 1]} : vector<2x128xf32> to vector<1x128xf32>
    %19 = vector.extract_strided_slice %17 {offsets = [1, 0], sizes = [1, 128], strides = [1, 1]} : vector<2x128xf32> to vector<1x128xf32>
    %20 = arith.subf %19, %18 : vector<1x128xf32>
    %c0_10 = arith.constant 0 : index
    %c0_11 = arith.constant 0 : index
    %c0_12 = arith.constant 0 : index
    %21 = vector.load %arg3[%c0_10, %c0_11, %c0_12] : memref<1x8x1xi32, #tpu.memory_space<vmem>>, vector<1x8x1xi32>
    %22 = vector.shape_cast %21 : vector<1x8x1xi32> to vector<8x1xi32>
    %c0_i32_13 = arith.constant 0 : i32
    %23 = vector.broadcast %c0_i32_13 : i32 to vector<8x1xi32>
    %24 = arith.cmpi ne, %22, %23 : vector<8x1xi32>
    %25 = arith.extui %24 : vector<8x1xi1> to vector<8x1xi32>
    %26 = arith.sitofp %25 : vector<8x1xi32> to vector<8x1xf32>
    %27 = vector.broadcast %18 : vector<1x128xf32> to vector<8x128xf32>
    %28 = arith.addf %16, %27 : vector<8x128xf32>
    %29 = vector.broadcast %26 : vector<8x1xf32> to vector<8x128xf32>
    %30 = vector.broadcast %20 : vector<1x128xf32> to vector<8x128xf32>
    %31 = arith.mulf %29, %30 : vector<8x128xf32>
    %32 = arith.addf %28, %31 : vector<8x128xf32>
    %cst = arith.constant dense<0.000000e+00> : vector<8xf32>
    %33 = vector.multi_reduction <add>, %32, %cst [1] : vector<8x128xf32> to vector<8xf32>
    %34 = vector.shape_cast %33 : vector<8xf32> to vector<8x1xf32>
    %35 = arith.mulf %32, %32 : vector<8x128xf32>
    %cst_14 = arith.constant dense<0.000000e+00> : vector<8xf32>
    %36 = vector.multi_reduction <add>, %35, %cst_14 [1] : vector<8x128xf32> to vector<8xf32>
    %37 = vector.shape_cast %36 : vector<8xf32> to vector<8x1xf32>
    %cst_15 = arith.constant 7.812500e-03 : f32
    %38 = vector.broadcast %cst_15 : f32 to vector<8x1xf32>
    %39 = arith.mulf %34, %38 : vector<8x1xf32>
    %cst_16 = arith.constant 7.812500e-03 : f32
    %40 = vector.broadcast %cst_16 : f32 to vector<8x1xf32>
    %41 = arith.mulf %37, %40 : vector<8x1xf32>
    %42 = arith.mulf %39, %39 : vector<8x1xf32>
    %43 = arith.subf %41, %42 : vector<8x1xf32>
    %44 = vector.broadcast %39 : vector<8x1xf32> to vector<8x128xf32>
    %45 = arith.subf %32, %44 : vector<8x128xf32>
    %cst_17 = arith.constant 9.99999996E-13 : f32
    %46 = vector.broadcast %cst_17 : f32 to vector<8x1xf32>
    %47 = arith.addf %43, %46 : vector<8x1xf32>
    %48 = math.rsqrt %47 : vector<8x1xf32>
    %49 = vector.broadcast %48 : vector<8x1xf32> to vector<8x128xf32>
    %50 = arith.mulf %45, %49 : vector<8x128xf32>
    %c0_18 = arith.constant 0 : index
    %c0_19 = arith.constant 0 : index
    %51 = vector.load %arg6[%c0_18, %c0_19] : memref<1x128xf32, #tpu.memory_space<vmem>>, vector<1x128xf32>
    %52 = vector.broadcast %51 : vector<1x128xf32> to vector<8x128xf32>
    %53 = arith.mulf %52, %50 : vector<8x128xf32>
    %c0_20 = arith.constant 0 : index
    %c0_21 = arith.constant 0 : index
    %54 = vector.load %arg7[%c0_20, %c0_21] : memref<1x128xf32, #tpu.memory_space<vmem>>, vector<1x128xf32>
    %55 = vector.broadcast %54 : vector<1x128xf32> to vector<8x128xf32>
    %56 = arith.addf %53, %55 : vector<8x128xf32>
    %c0_22 = arith.constant 0 : index
    %c0_23 = arith.constant 0 : index
    %c0_24 = arith.constant 0 : index
    %57 = vector.load %arg8[%c0_22, %c0_23, %c0_24] : memref<1x8x128xf32, #tpu.memory_space<vmem>>, vector<1x8x128xf32>
    %58 = vector.shape_cast %57 : vector<1x8x128xf32> to vector<8x128xf32>
    %59 = vector.shape_cast %56 : vector<8x128xf32> to vector<1x8x128xf32>
    tpu.vector_store %arg8[%c0_22, %c0_23, %c0_24], %59 {strides = array<i32>} : memref<1x8x128xf32, #tpu.memory_space<vmem>>, vector<1x8x128xf32>,
    return
  }
  func.func @transform_0(%arg0: i32, %arg1: i32, %arg2: memref<64xi32, #tpu.memory_space<smem>>) -> (i32, i32, i32) {
    %c0_i32 = arith.constant 0 : i32
    %c0_i32_0 = arith.constant 0 : i32
    return %arg0, %arg1, %c0_i32 : i32, i32, i32
  }
  func.func @transform_2(%arg0: i32, %arg1: i32, %arg2: memref<64xi32, #tpu.memory_space<smem>>) -> (i32, i32) {
    %c0_i32 = arith.constant 0 : i32
    %c0_i32_0 = arith.constant 0 : i32
    %c0_i32_1 = arith.constant 0 : i32
    return %c0_i32, %c0_i32_0 : i32, i32
  }
  func.func @transform_3(%arg0: i32, %arg1: i32, %arg2: memref<64xi32, #tpu.memory_space<smem>>) -> (i32, i32) {
    %c0_i32 = arith.constant 0 : i32
    %c0_i32_0 = arith.constant 0 : i32
    %c0_i32_1 = arith.constant 0 : i32
    return %c0_i32, %c0_i32_0 : i32, i32
  }
  func.func @transform_4(%arg0: i32, %arg1: i32, %arg2: memref<64xi32, #tpu.memory_space<smem>>) -> (i32, i32) {
    %c0_i32 = arith.constant 0 : i32
    %c0_i32_0 = arith.constant 0 : i32
    %c0_i32_1 = arith.constant 0 : i32
    return %c0_i32, %c0_i32_0 : i32, i32
  }
  func.func @transform_5(%arg0: i32, %arg1: i32, %arg2: memref<64xi32, #tpu.memory_space<smem>>) -> (i32, i32, i32) {
    %c0_i32 = arith.constant 0 : i32
    %c0_i32_0 = arith.constant 0 : i32
    return %arg0, %arg1, %c0_i32 : i32, i32, i32
  }
}

</mosaic_0001>

<llo_original>
// kernel: tpu_custom_call.1
$region0: #{tpu_custom_call.1}
  #allocation0 [shape = 'u32[]', space=smem, size = 0x4, offset = 0x4, fixed_abs, tag = 'smem constant byte address 0x4 - core index']
  #allocation1 [shape = 'u32[144,128]{1,0:T(1,128)}', space=vmem, size = 0x12000, scoped, tag = 'internal scratch']
  #allocation2 [shape = 'f32[2,8,128]{2,1,0:T(8,128)}', space=vmem, size = 0x2000, scoped, tag = 'scratch operand']
  #allocation3 [shape = 's32[2]{0}', space=sflag, size = 0x8, scoped, tag = 'scratch operand']
  #allocation4 [shape = 's32[1]{0}', space=sflag, size = 0x4, scoped, tag = 'scoped memory for tpu_custom_call.1']
  #allocation5 [shape = 'u8[512]{0}', space=smem, size = 0x200, scoped, tag = 'prefetched SMEM operand 0']
  #allocation8 [shape = 's32[]', space=sflag, size = 0x4, offset = 0, fixed_abs, tag = 'sflag constant byte address 0x0 - dummy sync flag']
  #allocation9 [shape = 's32[]', space=sflag, size = 0x4, offset = 0, fixed_abs, tag = 'sflag constant byte address 0x0 - dummy sync flag']
  %s0 = inlined_call_operand.vmem [shape: s32[64], index: 0, kind: input, shape index: {}]
  %s1 = inlined_call_operand.vmem [shape: s32[2,32,1], index: 1, kind: input, shape index: {}]
  %s2 = inlined_call_operand.vmem [shape: f32[64,128], index: 2, kind: input, shape index: {}]
  %s3 = inlined_call_operand.vmem [shape: f32[2,128], index: 3, kind: input, shape index: {}]
  %s4 = inlined_call_operand.vmem [shape: f32[1,128], index: 4, kind: input, shape index: {}]
  %s5 = inlined_call_operand.vmem [shape: f32[1,128], index: 5, kind: input, shape index: {}]
  %s6 = inlined_call_operand.hbm [shape: f32[2,32,128], index: 6, kind: output, shape index: {}]
  %s7 = sld [smem:[#allocation0]]
  $region131: #{tpu_custom_call.1} parent=0
    _
  %s9 = ssub.s32 1, %s7
  %s10 = scalar_select 0, %s9, %s7
  %s11 = sshll.u32 %s0, 4
  %s12 = int_to_ptr.vmem [resolvable:$true] %s11
  %14 = dma.vmem_to_smem %s12, 16, [#allocation5], [#allocation4]
  %15 = dma.done [#allocation4], 16
  %16 = sfence
  $region1: #{tpu_custom_call.1} parent=0
    #allocation6 [shape = 'u8[8192]{0}', space=vmem, size = 0x2000, scoped, tag = 'output window, operand 0']
    #allocation7 [shape = 's32[2]{0}', space=sflag, size = 0x8, scoped, tag = 'scoped memory for tpu_custom_call.1']
    %17 = vsyncpa [#allocation7], 0
    %s18 = scalar_lea.sflag [#allocation7], 1
    %19 = vsyncpa %s18, 0
    loop: start=0, step=1, limit=10
    $region2: #{tpu_custom_call.1} parent=1 // loop_pre_header
      _
    $region3: #{tpu_custom_call.1} parent=1 // loop_header
      %s21 = sphi 0, %s25
      %p22 = scmp.ge.s32.totalorder %s21, 10
      %s28 = sphi 0, %s40
      %s29 = sphi 0, %s36
      %s30 = sphi 0, %s28
      %s31 = sphi 0, %s29
      %s32 = sphi 0, %s30
      %s33 = sphi 0, %s31
      %s45 = sphi 0, %s47
      %s48 = sphi 0, %s45
      %s49 = sphi 0, %s48
      %s65 = sphi 0, %s49
      %s69 = sphi 0, %s69
      %s71 = sphi 0, %s69
      %s72 = sphi 0, %s71
      %s86 = sphi 0, %s72
      %s90 = sphi 0, %s90
      %s92 = sphi 0, %s90
      %s93 = sphi 0, %s92
      %s107 = sphi 0, %s93
      %s111 = sphi 0, %s111
      %s113 = sphi 0, %s111
      %s114 = sphi 0, %s113
      %s128 = sphi 0, %s114
      %s136 = sphi 0, %s138
      %s139 = sphi 0, %s136
      %s140 = sphi 0, %s139
      %s156 = sphi 0, %s140
    $region4: #{tpu_custom_call.1} parent=1 // loop_header_branch
      %24 = sbr.rel (%p22) target = $region8
    $region5: #{tpu_custom_call.1} parent=1 // loop_body
      %s26 = ssub.s32 %s21, 1
      %s27 = ssub.s32 %s21, 2
      %s34 = sadd.s32 1, %s29
      %p35 = scmp.ge.s32.totalorder %s34, 4
      %s36 = scalar_select %p35, 0, %s34
      %s37 = sadd.s32 1, %s28
      %s38 = scalar_select %p35, %s37, %s28
      %p39 = scmp.ge.s32.totalorder %s38, 2
      %s40 = scalar_select %p39, 0, %s38
      %s41 = ssub.s32 %s28, %s40
      %s42 = ssub.s32 %s29, %s36
      %s43 = sor.u32 %s41, %s42
      %p44 = scmp.eq.s32.totalorder %s43, 0
      %s46 = sadd.s32 %s45, 1
      %s47 = scalar_select %p44, %s45, %s46
      %p50 = pneg %p44
      %p51 = scmp.eq.s32.totalorder %s21, 7
      %p52 = por %p50, %p51
      %p53 = scmp.ne.s32.totalorder %s45, %s48
      %p54 = scmp.eq.s32.totalorder %s21, 0
      %p55 = por %p53, %p54
      %p56 = scmp.ne.s32.totalorder %s45, %s48
      %p57 = scmp.eq.s32.totalorder %s26, 7
      %p58 = por %p56, %p57
      %p59 = scmp.ne.s32.totalorder %s48, %s49
      %p60 = scmp.eq.s32.totalorder %s26, 0
      %p61 = por %p59, %p60
      %p62 = scmp.ne.s32.totalorder %s48, %s49
      %p63 = scmp.eq.s32.totalorder %s27, 7
      %p64 = por %p62, %p63
      %p66 = scmp.ne.s32.totalorder %s49, %s65
      %p67 = scmp.eq.s32.totalorder %s27, 0
      %p68 = por %p66, %p67
      %s70 = sadd.s32 %s69, 1
      %p73 = scmp.eq.s32.totalorder %s21, 7
      %p74 = scmp.ne.s32.totalorder %s69, %s71
      %p75 = scmp.eq.s32.totalorder %s21, 0
      %p76 = por %p74, %p75
      %p77 = scmp.ne.s32.totalorder %s69, %s71
      %p78 = scmp.eq.s32.totalorder %s26, 7
      %p79 = por %p77, %p78
      %p80 = scmp.ne.s32.totalorder %s71, %s72
      %p81 = scmp.eq.s32.totalorder %s26, 0
      %p82 = por %p80, %p81
      %p83 = scmp.ne.s32.totalorder %s71, %s72
      %p84 = scmp.eq.s32.totalorder %s27, 7
      %p85 = por %p83, %p84
      %p87 = scmp.ne.s32.totalorder %s72, %s86
      %p88 = scmp.eq.s32.totalorder %s27, 0
      %p89 = por %p87, %p88
      %s91 = sadd.s32 %s90, 1
      %p94 = scmp.eq.s32.totalorder %s21, 7
      %p95 = scmp.ne.s32.totalorder %s90, %s92
      %p96 = scmp.eq.s32.totalorder %s21, 0
      %p97 = por %p95, %p96
      %p98 = scmp.ne.s32.totalorder %s90, %s92
      %p99 = scmp.eq.s32.totalorder %s26, 7
      %p100 = por %p98, %p99
      %p101 = scmp.ne.s32.totalorder %s92, %s93
      %p102 = scmp.eq.s32.totalorder %s26, 0
      %p103 = por %p101, %p102
      %p104 = scmp.ne.s32.totalorder %s92, %s93
      %p105 = scmp.eq.s32.totalorder %s27, 7
      %p106 = por %p104, %p105
      %p108 = scmp.ne.s32.totalorder %s93, %s107
      %p109 = scmp.eq.s32.totalorder %s27, 0
      %p110 = por %p108, %p109
      %s112 = sadd.s32 %s111, 1
      %p115 = scmp.eq.s32.totalorder %s21, 7
      %p116 = scmp.ne.s32.totalorder %s111, %s113
      %p117 = scmp.eq.s32.totalorder %s21, 0
      %p118 = por %p116, %p117
      %p119 = scmp.ne.s32.totalorder %s111, %s113
      %p120 = scmp.eq.s32.totalorder %s26, 7
      %p121 = por %p119, %p120
      %p122 = scmp.ne.s32.totalorder %s113, %s114
      %p123 = scmp.eq.s32.totalorder %s26, 0
      %p124 = por %p122, %p123
      %p125 = scmp.ne.s32.totalorder %s113, %s114
      %p126 = scmp.eq.s32.totalorder %s27, 7
      %p127 = por %p125, %p126
      %p129 = scmp.ne.s32.totalorder %s114, %s128
      %p130 = scmp.eq.s32.totalorder %s27, 0
      %p131 = por %p129, %p130
      %s132 = ssub.s32 %s28, %s40
      %s133 = ssub.s32 %s29, %s36
      %s134 = sor.u32 %s132, %s133
      %p135 = scmp.eq.s32.totalorder %s134, 0
      %s137 = sadd.s32 %s136, 1
      %s138 = scalar_select %p135, %s136, %s137
      %p141 = pneg %p135
      %p142 = scmp.eq.s32.totalorder %s21, 7
      %p143 = por %p141, %p142
      %p144 = scmp.ne.s32.totalorder %s136, %s139
      %p145 = scmp.eq.s32.totalorder %s21, 0
      %p146 = por %p144, %p145
      %p147 = scmp.ne.s32.totalorder %s136, %s139
      %p148 = scmp.eq.s32.totalorder %s26, 7
      %p149 = por %p147, %p148
      %p150 = scmp.ne.s32.totalorder %s139, %s140
      %p151 = scmp.eq.s32.totalorder %s26, 0
      %p152 = por %p150, %p151
      %p153 = scmp.ne.s32.totalorder %s139, %s140
      %p154 = scmp.eq.s32.totalorder %s27, 7
      %p155 = por %p153, %p154
      %p157 = scmp.ne.s32.totalorder %s140, %s156
      %p158 = scmp.eq.s32.totalorder %s27, 0
      %p159 = por %p157, %p158
      %p160 = scmp.le.s32.totalorder 1, %s21
      %p161 = scmp.lt.s32.totalorder %s21, 9
      %p162 = pnand %p160, %p161
      %p163 = pneg %p162
      // Predicated region
      $region9: #{tpu_custom_call.1} parent=5 // pred_check
        _
      $region10: #{tpu_custom_call.1} parent=5 // pred_check_branch
        %165 = sbr.rel (%p162) target = $region12
      $region11: #{tpu_custom_call.1} parent=5 // pred_region
        %s166 = ssub.s32 %s21, 1
        // Predicated region
        $region13: #{tpu_custom_call.1} parent=11 // pred_check
          %p167 = pneg %p82
        $region14: #{tpu_custom_call.1} parent=11 // pred_check_branch
          %169 = sbr.rel (%p167) target = $region16
        $region15: #{tpu_custom_call.1} parent=11 // pred_region
          _
        $region16: #{tpu_custom_call.1} parent=11 // pred_fallthru
          _
        // Predicated region
        $region17: #{tpu_custom_call.1} parent=11 // pred_check
          %p170 = pneg %p103
        $region18: #{tpu_custom_call.1} parent=11 // pred_check_branch
          %172 = sbr.rel (%p170) target = $region20
        $region19: #{tpu_custom_call.1} parent=11 // pred_region
          _
        $region20: #{tpu_custom_call.1} parent=11 // pred_fallthru
          _
        // Predicated region
        $region21: #{tpu_custom_call.1} parent=11 // pred_check
          %p173 = pneg %p124
        $region22: #{tpu_custom_call.1} parent=11 // pred_check_branch
          %175 = sbr.rel (%p173) target = $region24
        $region23: #{tpu_custom_call.1} parent=11 // pred_region
          _
        $region24: #{tpu_custom_call.1} parent=11 // pred_fallthru
          _
      $region12: #{tpu_custom_call.1} parent=5 // pred_fallthru
        _
      %p176 = scmp.lt.s32.totalorder %s21, 8
      // Predicated region
      $region25: #{tpu_custom_call.1} parent=5 // pred_check
        %p177 = pneg %p176
      $region26: #{tpu_custom_call.1} parent=5 // pred_check_branch
        %179 = sbr.rel (%p177) target = $region28
      $region27: #{tpu_custom_call.1} parent=5 // pred_region
        // Predicated region
        $region29: #{tpu_custom_call.1} parent=27 // pred_check
          %p180 = pneg %p55
        $region30: #{tpu_custom_call.1} parent=27 // pred_check_branch
          %182 = sbr.rel (%p180) target = $region32
        $region31: #{tpu_custom_call.1} parent=27 // pred_region
          %p183 = scmp.lt.s32.totalorder %s28, 1
          %s184 = scalar_select %p183, %s28, 1
          %p185 = scmp.lt.s32.totalorder %s29, 3
          %s186 = scalar_select %p185, %s29, 3
          %s187 = smul.addr %s184, 4
          %s188 = sadd.s32 %s186, %s187
          %s189 = smul.addr %s188, 8
          %s190 = scalar_lea.vmem %s1, %s189
        $region32: #{tpu_custom_call.1} parent=27 // pred_fallthru
          _
      $region28: #{tpu_custom_call.1} parent=5 // pred_fallthru
        _
      %p191 = scmp.le.s32.totalorder 1, %s21
      %p192 = scmp.lt.s32.totalorder %s21, 9
      %p193 = pnand %p191, %p192
      %p194 = pneg %p193
      // Predicated region
      $region33: #{tpu_custom_call.1} parent=5 // pred_check
        _
      $region34: #{tpu_custom_call.1} parent=5 // pred_check_branch
        %196 = sbr.rel (%p193) target = $region36
      $region35: #{tpu_custom_call.1} parent=5 // pred_region
        %s197 = ssub.s32 %s21, 1
        %p198 = scmp.lt.s32.totalorder %s30, 1
        %s199 = scalar_select %p198, %s30, 1
        %p200 = scmp.lt.s32.totalorder %s31, 3
        %s201 = scalar_select %p200, %s31, 3
        %s202 = smul.addr %s199, 4
        %s203 = sadd.s32 %s201, %s202
        %s204 = smul.addr %s203, 8
        %s205 = scalar_lea.vmem %s1, %s204
        %p206 = pneg %p61
        %p207 = pneg %p58
        %p208 = pneg %p82
        %p209 = pneg %p79
        %p210 = pneg %p103
        %p211 = pneg %p100
        %p212 = pneg %p124
        %p213 = pneg %p121
        %p214 = pneg %p152
        %p215 = pneg %p149
        %s216 = sand.u32 %s139, 1
        %s217 = scalar_lea.sflag [#allocation7], %s216
        %s218 = sand.u32 %s139, 1
        %s219 = smul.addr %s218, 8
        %s220 = scalar_lea.vmem [#allocation6], %s219
        %p221 = scmp.lt.s32.totalorder %s30, 1
        %s222 = scalar_select %p221, %s30, 1
        %p223 = scmp.lt.s32.totalorder %s31, 3
        %s224 = scalar_select %p223, %s31, 3
        %s225 = smul.addr %s222, 4
        %s226 = sadd.s32 %s224, %s225
        %s227 = smul.addr %s226, 8
        %s228 = scalar_lea.vmem %s1, %s227
        %s229 = sand.u32 %s31, 1
        %s230 = smul.u32 %s30, 32
        %p231 = scmp.eq.s32.totalorder %s31, 0
        // Predicated region
        $region37: #{tpu_custom_call.1} parent=35 // pred_check
          %p232 = pneg %p231
        $region38: #{tpu_custom_call.1} parent=35 // pred_check_branch
          %234 = sbr.rel (%p232) target = $region40
        $region39: #{tpu_custom_call.1} parent=35 // pred_region
          loop: start=0, step=1, limit=8
          $region41: #{tpu_custom_call.1} parent=39 // loop_pre_header
            _
          $region42: #{tpu_custom_call.1} parent=39 // loop_header
            %s236 = sphi 0, %s240
            %p237 = scmp.ge.s32.totalorder %s236, 8
          $region43: #{tpu_custom_call.1} parent=39 // loop_header_branch
            %239 = sbr.rel (%p237) target = $region47
          $region44: #{tpu_custom_call.1} parent=39 // loop_body
            %s241 = sadd.s32 %s230, %s236
            %s242 = sld [smem:[#allocation5 + %s241]]
            %p243 = scmp.gt.s32.totalorder %s242, 0
            %s244 = scalar_select %p243, %s242, 0
            %p245 = scmp.lt.s32.totalorder %s244, 63
            %s246 = scalar_select %p245, %s244, 63
            %s247 = scalar_lea.vmem %s2, %s246
            %s248 = scalar_lea.vmem [#allocation2], %s236
            %p250 = scmp.lt.u32.totalorder 1, 8
            %p251 = pneg %p250
            // Predicated region
            $region48: #{tpu_custom_call.1} parent=44 // pred_check
              _
            $region49: #{tpu_custom_call.1} parent=44 // pred_check_branch
              %253 = sbr.rel (%p250) target = $region51
            $region50: #{tpu_custom_call.1} parent=44 // pred_region
              %s268 = sand.u32 1, 7
              %p269 = scmp.eq.s32.totalorder %s268, 0
              %p270 = pneg %p269
              // Predicated region
              $region63: #{tpu_custom_call.1} parent=50 // pred_check
                _
              $region64: #{tpu_custom_call.1} parent=50 // pred_check_branch
                %272 = sbr.rel (%p269) target = $region66
              $region65: #{tpu_custom_call.1} parent=50 // pred_region
                %s273 = sand.u32 1, 7
                %s274 = ssub.s32 1, %s273
                %s275 = scalar_lea.vmem %s247, %s274
                %s276 = ssub.s32 1, %s273
                %s277 = scalar_lea.vmem %s248, %s276 [#allocation2]
                %s278 = sshllo.u32 0, %s273
                loop: start=0, step=1, limit=1
                $region67: #{tpu_custom_call.1} parent=65 // loop_pre_header
                  _
                $region68: #{tpu_custom_call.1} parent=65 // loop_header
                  %s280 = sphi 0, %s284
                  %p281 = scmp.ge.s32.totalorder %s280, 1
                  %s285 = sphi %s275, %s275
                  %s286 = sphi %s277, %s277
                $region69: #{tpu_custom_call.1} parent=65 // loop_header_branch
                  %283 = sbr.rel (%p281) target = $region73
                $region70: #{tpu_custom_call.1} parent=65 // loop_body
                  %v287 = vld [vmem:[%s285] sm:%s278]
                  %288 = vst [vmem:[%s286] sm:%s278] %v287
                $region71: #{tpu_custom_call.1} parent=65 // loop_footer
                  %s284 = sadd.s32 1, %s280
                $region72: #{tpu_custom_call.1} parent=65 // loop_footer_branch
                  %279 = sbr.rel target = $region68
                $region73: #{tpu_custom_call.1} parent=65 // loop_exit
                  _
              $region66: #{tpu_custom_call.1} parent=50 // pred_fallthru
                _
            $region51: #{tpu_custom_call.1} parent=44 // pred_fallthru
              _
            // Predicated region
            $region52: #{tpu_custom_call.1} parent=44 // pred_check
              %p254 = pneg %p250
            $region53: #{tpu_custom_call.1} parent=44 // pred_check_branch
              %256 = sbr.rel (%p254) target = $region55
            $region54: #{tpu_custom_call.1} parent=44 // pred_region
              %s257 = sshllo.u32 0, 1
              loop: start=0, step=1, limit=1
              $region56: #{tpu_custom_call.1} parent=54 // loop_pre_header
                _
              $region57: #{tpu_custom_call.1} parent=54 // loop_header
                %s259 = sphi 0, %s263
                %p260 = scmp.ge.s32.totalorder %s259, 1
                %s264 = sphi %s247, %s247
                %s265 = sphi %s248, %s248
              $region58: #{tpu_custom_call.1} parent=54 // loop_header_branch
                %262 = sbr.rel (%p260) target = $region62
              $region59: #{tpu_custom_call.1} parent=54 // loop_body
                %v266 = vld [vmem:[%s264] sm:%s257]
                %267 = vst [vmem:[%s265] sm:%s257] %v266
              $region60: #{tpu_custom_call.1} parent=54 // loop_footer
                %s263 = sadd.s32 1, %s259
              $region61: #{tpu_custom_call.1} parent=54 // loop_footer_branch
                %258 = sbr.rel target = $region57
              $region62: #{tpu_custom_call.1} parent=54 // loop_exit
                _
            $region55: #{tpu_custom_call.1} parent=44 // pred_fallthru
              _
            // Predicated region
            $region74: #{tpu_custom_call.1} parent=44 // pred_check
              _
            $region75: #{tpu_custom_call.1} parent=44 // pred_check_branch
              %291 = sbr.rel (0) target = $region77
            $region76: #{tpu_custom_call.1} parent=44 // pred_region
              %292 = vsyncadd [#allocation3], 16
            $region77: #{tpu_custom_call.1} parent=44 // pred_fallthru
              _
          $region45: #{tpu_custom_call.1} parent=39 // loop_footer
            %s240 = sadd.s32 1, %s236
          $region46: #{tpu_custom_call.1} parent=39 // loop_footer_branch
            %235 = sbr.rel target = $region42
          $region47: #{tpu_custom_call.1} parent=39 // loop_exit
            _
        $region40: #{tpu_custom_call.1} parent=35 // pred_fallthru
          _
        %s293 = sadd.s32 %s31, 1
        %p294 = scmp.lt.s32.totalorder %s293, 4
        // Predicated region
        $region78: #{tpu_custom_call.1} parent=35 // pred_check
          %p295 = pneg %p294
        $region79: #{tpu_custom_call.1} parent=35 // pred_check_branch
          %297 = sbr.rel (%p295) target = $region81
        $region80: #{tpu_custom_call.1} parent=35 // pred_region
          %s298 = ssub.s32 1, %s229
          %s299 = smul.u32 %s293, 8
          %s300 = sadd.s32 %s230, %s299
          loop: start=0, step=1, limit=8
          $region82: #{tpu_custom_call.1} parent=80 // loop_pre_header
            _
          $region83: #{tpu_custom_call.1} parent=80 // loop_header
            %s302 = sphi 0, %s306
            %p303 = scmp.ge.s32.totalorder %s302, 8
          $region84: #{tpu_custom_call.1} parent=80 // loop_header_branch
            %305 = sbr.rel (%p303) target = $region88
          $region85: #{tpu_custom_call.1} parent=80 // loop_body
            %s307 = sadd.s32 %s300, %s302
            %s308 = sld [smem:[#allocation5 + %s307]]
            %p309 = scmp.gt.s32.totalorder %s308, 0
            %s310 = scalar_select %p309, %s308, 0
            %p311 = scmp.lt.s32.totalorder %s310, 63
            %s312 = scalar_select %p311, %s310, 63
            %s313 = scalar_lea.vmem %s2, %s312
            %s314 = smul.u32 %s298, 8
            %s315 = sadd.s32 %s302, %s314
            %s316 = scalar_lea.vmem [#allocation2], %s315
            %s317 = scalar_lea.sflag [#allocation3], %s298
            %p319 = scmp.lt.u32.totalorder 1, 8
            %p320 = pneg %p319
            // Predicated region
            $region89: #{tpu_custom_call.1} parent=85 // pred_check
              _
            $region90: #{tpu_custom_call.1} parent=85 // pred_check_branch
              %322 = sbr.rel (%p319) target = $region92
            $region91: #{tpu_custom_call.1} parent=85 // pred_region
              %s337 = sand.u32 1, 7
              %p338 = scmp.eq.s32.totalorder %s337, 0
              %p339 = pneg %p338
              // Predicated region
              $region104: #{tpu_custom_call.1} parent=91 // pred_check
                _
              $region105: #{tpu_custom_call.1} parent=91 // pred_check_branch
                %341 = sbr.rel (%p338) target = $region107
              $region106: #{tpu_custom_call.1} parent=91 // pred_region
                %s342 = sand.u32 1, 7
                %s343 = ssub.s32 1, %s342
                %s344 = scalar_lea.vmem %s313, %s343
                %s345 = ssub.s32 1, %s342
                %s346 = scalar_lea.vmem %s316, %s345 [#allocation2]
                %s347 = sshllo.u32 0, %s342
                loop: start=0, step=1, limit=1
                $region108: #{tpu_custom_call.1} parent=106 // loop_pre_header
                  _
                $region109: #{tpu_custom_call.1} parent=106 // loop_header
                  %s349 = sphi 0, %s353
                  %p350 = scmp.ge.s32.totalorder %s349, 1
                  %s354 = sphi %s344, %s344
                  %s355 = sphi %s346, %s346
                $region110: #{tpu_custom_call.1} parent=106 // loop_header_branch
                  %352 = sbr.rel (%p350) target = $region114
                $region111: #{tpu_custom_call.1} parent=106 // loop_body
                  %v356 = vld [vmem:[%s354] sm:%s347]
                  %357 = vst [vmem:[%s355] sm:%s347] %v356
                $region112: #{tpu_custom_call.1} parent=106 // loop_footer
                  %s353 = sadd.s32 1, %s349
                $region113: #{tpu_custom_call.1} parent=106 // loop_footer_branch
                  %348 = sbr.rel target = $region109
                $region114: #{tpu_custom_call.1} parent=106 // loop_exit
                  _
              $region107: #{tpu_custom_call.1} parent=91 // pred_fallthru
                _
            $region92: #{tpu_custom_call.1} parent=85 // pred_fallthru
              _
            // Predicated region
            $region93: #{tpu_custom_call.1} parent=85 // pred_check
              %p323 = pneg %p319
            $region94: #{tpu_custom_call.1} parent=85 // pred_check_branch
              %325 = sbr.rel (%p323) target = $region96
            $region95: #{tpu_custom_call.1} parent=85 // pred_region
              %s326 = sshllo.u32 0, 1
              loop: start=0, step=1, limit=1
              $region97: #{tpu_custom_call.1} parent=95 // loop_pre_header
                _
              $region98: #{tpu_custom_call.1} parent=95 // loop_header
                %s328 = sphi 0, %s332
                %p329 = scmp.ge.s32.totalorder %s328, 1
                %s333 = sphi %s313, %s313
                %s334 = sphi %s316, %s316
              $region99: #{tpu_custom_call.1} parent=95 // loop_header_branch
                %331 = sbr.rel (%p329) target = $region103
              $region100: #{tpu_custom_call.1} parent=95 // loop_body
                %v335 = vld [vmem:[%s333] sm:%s326]
                %336 = vst [vmem:[%s334] sm:%s326] %v335
              $region101: #{tpu_custom_call.1} parent=95 // loop_footer
                %s332 = sadd.s32 1, %s328
              $region102: #{tpu_custom_call.1} parent=95 // loop_footer_branch
                %327 = sbr.rel target = $region98
              $region103: #{tpu_custom_call.1} parent=95 // loop_exit
                _
            $region96: #{tpu_custom_call.1} parent=85 // pred_fallthru
              _
            // Predicated region
            $region115: #{tpu_custom_call.1} parent=85 // pred_check
              _
            $region116: #{tpu_custom_call.1} parent=85 // pred_check_branch
              %360 = sbr.rel (0) target = $region118
            $region117: #{tpu_custom_call.1} parent=85 // pred_region
              %361 = vsyncadd %s317, 16
            $region118: #{tpu_custom_call.1} parent=85 // pred_fallthru
              _
          $region86: #{tpu_custom_call.1} parent=80 // loop_footer
            %s306 = sadd.s32 1, %s302
          $region87: #{tpu_custom_call.1} parent=80 // loop_footer_branch
            %301 = sbr.rel target = $region83
          $region88: #{tpu_custom_call.1} parent=80 // loop_exit
            _
        $region81: #{tpu_custom_call.1} parent=35 // pred_fallthru
          _
        %s362 = smul.u32 %s229, 8
        %s363 = scalar_lea.vmem [#allocation2], %s362
        %s364 = scalar_lea.sflag [#allocation3], %s229
        %s365 = smul.u32 8, 1
        %s366 = sshll.u32 %s365, 4
        %367 = dma.done %s364, %s366
        %v368 = vld [vmem:[%s363] sm:$0xff]
        %v369 = vld [vmem:[%s3] sm:$0x3]
        %v371 = vrot.slane %v369, 7
        %v373 = vsub.f32 %v369, %v371
        %v374 = vld [vmem:[%s228] sm:$0xff]
        %vm375 = vcmp.ne.s32.totalorder %v374, 0
        %v376 = vsel %vm375, 1, 0
        %v377 = vcvt.s32.f32 %v376
        %v378 = vlaneseq
        %v379 = vshrl.u32 %v378, 7
        %v380 = vsub.s32 0, %v379
        %v381 = vrot.slane %v369, %v380
        %v382 = vadd.f32 %v368, %v381
        %384 = vset.pattern.permute.xlu0 0
        %385 = vperm.xlu0 %384, %v377
        %v386 = vpop.permute.xlu0 %385
        %v388 = vlaneseq
        %v389 = vshrl.u32 %v388, 7
        %v390 = vsub.s32 1, %v389
        %v391 = vrot.slane %v373, %v390
        %v392 = vmul.f32 %v386, %v391
        %v393 = vadd.f32 %v382, %v392
        %394 = vadd.xlane.f32.xlu0 %v393
        %v395 = vpop.xlane.xlu0 %394
        %v396 = vmul.f32 %v393, %v393
        %397 = vadd.xlane.f32.xlu0 %v396
        %v398 = vpop.xlane.xlu0 %397
        %v399 = vmul.f32 %v395, 0.0078125
        %v400 = vmul.f32 %v398, 0.0078125
        %v401 = vmul.f32 %v399, %v399
        %v402 = vsub.f32 %v400, %v401
        %v403 = vsub.f32 %v393, %v399
        %v404 = vadd.f32 %v402, 1e-12
        %v405 = vrsqrt.pop %v404
        %v406 = vmul.f32 %v403, %v405
        %v407 = vld [vmem:[%s4] sm:$0x1]
        %v409 = vlaneseq
        %v410 = vshrl.u32 %v409, 7
        %v411 = vsub.s32 0, %v410
        %v412 = vrot.slane %v407, %v411
        %v414 = vmul.f32 %v412, %v406
        %v415 = vld [vmem:[%s5] sm:$0x1]
        %v417 = vlaneseq
        %v418 = vshrl.u32 %v417, 7
        %v419 = vsub.s32 0, %v418
        %v420 = vrot.slane %v415, %v419
        %v422 = vadd.f32 %v414, %v420
        %423 = vst [vmem:[%s220] sm:$0xff] %v422
        %s424 = sand.u32 %s139, 1
        %s425 = scalar_lea.sflag [#allocation7], %s424
        %s426 = sand.u32 %s139, 1
        %s427 = smul.addr %s426, 8
        %s428 = scalar_lea.vmem [#allocation6], %s427
        // Predicated region
        $region119: #{tpu_custom_call.1} parent=35 // pred_check
          %p429 = pneg %p149
        $region120: #{tpu_custom_call.1} parent=35 // pred_check_branch
          %431 = sbr.rel (%p429) target = $region122
        $region121: #{tpu_custom_call.1} parent=35 // pred_region
          %s433 = ssub.s32 128, 128
          %434 = vsyncadd %s425, %s433
          %s435 = smul.addr %s30, 4
          %s436 = sadd.s32 %s31, %s435
          %s437 = smul.addr %s436, 128
          %s438 = scalar_lea.hbm %s6, %s437
          %s440 = sshll.u32 %s428, 4
          %s441 = int_to_ptr.vmem [resolvable:$true] %s440
          %443 = dma.vmem_to_hbm [thread:$0]  %s441, 128, %s438, %s425
        $region122: #{tpu_custom_call.1} parent=35 // pred_fallthru
          _
      $region36: #{tpu_custom_call.1} parent=5 // pred_fallthru
        _
      %p444 = scmp.le.s32.totalorder 2, %s21
      // Predicated region
      $region123: #{tpu_custom_call.1} parent=5 // pred_check
        %p445 = pneg %p444
      $region124: #{tpu_custom_call.1} parent=5 // pred_check_branch
        %447 = sbr.rel (%p445) target = $region126
      $region125: #{tpu_custom_call.1} parent=5 // pred_region
        %s448 = ssub.s32 %s21, 2
        // Predicated region
        $region127: #{tpu_custom_call.1} parent=125 // pred_check
          %p449 = pneg %p155
        $region128: #{tpu_custom_call.1} parent=125 // pred_check_branch
          %451 = sbr.rel (%p449) target = $region130
        $region129: #{tpu_custom_call.1} parent=125 // pred_region
          %s452 = sand.u32 %s140, 1
          %s453 = scalar_lea.sflag [#allocation7], %s452
          %s454 = sand.u32 %s140, 1
          %s455 = smul.addr %s454, 8
          %s456 = scalar_lea.vmem [#allocation6], %s455
          %457 = dma.done %s453, 128
        $region130: #{tpu_custom_call.1} parent=125 // pred_fallthru
          _
      $region126: #{tpu_custom_call.1} parent=5 // pred_fallthru
        _
    $region6: #{tpu_custom_call.1} parent=1 // loop_footer
      %s25 = sadd.s32 1, %s21
    $region7: #{tpu_custom_call.1} parent=1 // loop_footer_branch
      %20 = sbr.rel target = $region3
    $region8: #{tpu_custom_call.1} parent=1 // loop_exit
      _
    %458 = vsyncpa [#allocation7], 1
    %s459 = scalar_lea.sflag [#allocation7], 1
    %460 = vsyncpa %s459, 1
  %461 = vsyncmov [#allocation3]
  %s462 = vpop.sfrf %461
  %p463 = scmp.eq.s32.totalorder %s462, 0
  %p464 = pneg %p463
  %466 = shalt.err (%p464)
  %s467 = scalar_lea.sflag [#allocation3], 1
  %468 = vsyncmov %s467
  %s469 = vpop.sfrf %468
  %p470 = scmp.eq.s32.totalorder %s469, 0
  %p471 = pneg %p470
  %473 = shalt.err (%p471)

</llo_original>
